<compile_context>
chip_gen: v6e
topology: v6e:2x2x1
jax: 0.10.0
libtpu: 0.0.40
codegen_flags: <defaults>
</compile_context>

<pallas_src>
import jax
import jax.numpy as jnp
from jax import lax
from jax.experimental import pallas as pl
from jax.experimental.pallas import tpu as pltpu


def _round_up(x, m):
    return (x + m - 1) // m * m


def _vmem_budgets(override_block_bytes=None):
    """Generation-aware VMEM budgets.

    Returns (stream_block_budget, vmem_request_cap):
      * stream_block_budget: max bytes for ONE streaming block of ONE stream
        (4 streams x 2 pipeline buffers must fit under the request cap).
      * vmem_request_cap: largest vmem_limit_bytes we will ever request.
    """
    try:
        vmem_cap = int(pltpu.get_tpu_info().vmem_capacity_bytes)
    except Exception:
        vmem_cap = 64 * 1024 * 1024  # conservative (v7x-sized) fallback
    # ~13/16 of physical: ~104 MiB on 128-MiB parts (v5e/v6e), ~52 MiB on v7x.
    vmem_request_cap = vmem_cap * 13 // 16
    headroom = 4 * 1024 * 1024            # weights, gate tensors, internal scratch
    stream_block_budget = (vmem_request_cap - headroom) // 8   # 4 streams x 2 bufs
    if override_block_bytes is not None:
        stream_block_budget = min(stream_block_budget, override_block_bytes)
    return stream_block_budget, vmem_request_cap


# ---------------------------------------------------------------------------
# Fused single-pass kernel: one (bblk, C, HW) block per grid step.
# ---------------------------------------------------------------------------
def _fused_kernel(rgb_ref, ir_ref, w1_ref, b1_ref, w2_ref,
                  out_rgb_ref, out_ir_ref):
    rgb = rgb_ref[...]                                            # (bblk, C, HW)
    ir = ir_ref[...]
    # f32-accumulated spatial sum of the diff. The block's last dim is the full
    # array dim, so Mosaic masks any ragged tail in the reduction itself.
    gap = jnp.sum(rgb - ir, axis=-1, dtype=jnp.float32)           # (bblk, C)
    # Gate: GAP's 1/(H*W) and the eval-mode BN scale are folded into w1; the
    # BN shift is the bias; the fc2 halves are pre-subtracted so the 2-way
    # softmax reduces to a single sigmoid.
    h = jnp.maximum(
        jnp.dot(gap, w1_ref[...], preferred_element_type=jnp.float32)
        + b1_ref[...], 0.0)                                       # (bblk, HID)
    zd = jnp.dot(h, w2_ref[...], preferred_element_type=jnp.float32)  # (bblk, C)
    wr = pl.reciprocal(1.0 + jnp.exp(-zd), approx=False)          # sigmoid == pair softmax
    wi = 1.0 - wr
    # f32 gate weight times input, cast the product once (reference numerics).
    out_rgb_ref[...] = (wr[:, :, None] * rgb).astype(out_rgb_ref.dtype)
    out_ir_ref[...] = (wi[:, :, None] * ir).astype(out_ir_ref.dtype)


# ---------------------------------------------------------------------------
# Split path, pass 1: spatially tiled GAP reduction + gating (per batch elem).
# ---------------------------------------------------------------------------
def _make_gate_kernel(C, HWT, HW):
    n_lane_chunks = HWT // 128
    ragged = (HW % HWT) != 0

    def gate_kernel(rgb_ref, ir_ref, w1_ref, b1_ref, w2_ref,
                    wr_ref, wi_ref, acc_ref):
        s = pl.program_id(1)

        @pl.when(s == 0)
        def _():
            acc_ref[...] = jnp.zeros_like(acc_ref)

        diff = rgb_ref[...] - ir_ref[...]                         # (C, HWT)
        if ragged:
            lane = lax.broadcasted_iota(jnp.int32, (C, HWT), 1)
            diff = jnp.where(s * HWT + lane < HW, diff, 0)        # mask OOB tail

        # Lane-parallel partial sum: fold HWT lanes into 128 with VALU-only,
        # 128-aligned slice adds; the cross-lane (XLU) reduce happens once per
        # batch element, in the finalize branch below.
        partial = diff[:, 0:128].astype(jnp.float32)
        for t in range(1, n_lane_chunks):
            partial = partial + diff[:, t * 128:(t + 1) * 128].astype(jnp.float32)
        acc_ref[...] += partial                                   # (C, 128)

        @pl.when(s == pl.num_programs(1) - 1)
        def _():
            gap = jnp.sum(acc_ref[...], axis=-1, keepdims=True)   # (C, 1)
            h = jnp.maximum(
                jnp.dot(w1_ref[...], gap, preferred_element_type=jnp.float32)
                + b1_ref[...], 0.0)                               # (HID, 1)
            zd = jnp.dot(w2_ref[...], h, preferred_element_type=jnp.float32)  # (C, 1)
            wr = pl.reciprocal(1.0 + jnp.exp(-zd), approx=False)
            wr_ref[...] = wr
            wi_ref[...] = 1.0 - wr

    return gate_kernel


# ---------------------------------------------------------------------------
# Split path, pass 2: lane-dense streaming apply of the gate weights.
# ---------------------------------------------------------------------------
def _apply_kernel(wr_ref, wi_ref, rgb_ref, ir_ref, out_rgb_ref, out_ir_ref):
    rgb = rgb_ref[...]                                            # (C, HWT)
    ir = ir_ref[...]
    out_rgb_ref[...] = (wr_ref[...] * rgb).astype(out_rgb_ref.dtype)
    out_ir_ref[...] = (wi_ref[...] * ir).astype(out_ir_ref.dtype)


def rgbt_diff_enhancive(feat_rgb, feat_ir, w1, bn_scale, bn_shift, w2, *,
                        block_budget_bytes=None):
    """feat_rgb, feat_ir: (B, C, H, W). Returns [rgb_specific, ir_specific]."""
    B, C, H, W = feat_rgb.shape
    assert feat_ir.shape == (B, C, H, W)
    HW = H * W
    HID = w1.shape[0]
    assert w1.shape == (HID, C) and w2.shape == (2 * C, HID)

    f32 = jnp.float32
    # Fold GAP's 1/(H*W) and the eval-mode BN affine into fc1 (scale -> weight,
    # shift -> bias); pre-subtract the two fc2 halves (pair softmax -> sigmoid).
    w1_col = (bn_scale.astype(f32)[:, None] * w1.astype(f32)) * (1.0 / HW)  # (HID, C)
    b1_col = bn_shift.astype(f32).reshape(HID, 1)                           # (HID, 1)
    w2f = w2.astype(f32)
    w2_col = w2f[:C, :] - w2f[C:, :]                                        # (C, HID)

    rgb2d = feat_rgb.reshape(B, C, HW)
    ir2d = feat_ir.reshape(B, C, HW)
    elem = feat_rgb.dtype.itemsize
    # Conservative VMEM footprint of one (C, HW) feature slab (tile padding).
    per_b_vmem = _round_up(C, 16) * _round_up(HW, 128) * elem

    stream_budget, vmem_cap_req = _vmem_budgets(block_budget_bytes)
    headroom = 4 * 1024 * 1024
    out_shape = (jax.ShapeDtypeStruct((B, C, HW), feat_rgb.dtype),
                 jax.ShapeDtypeStruct((B, C, HW), feat_ir.dtype))

    if per_b_vmem <= stream_budget:
        # ------------------------ fused single-pass path -------------------
        # Size the batch block for >= min(B, 4) grid steps (pipelining +
        # megacore) instead of maximizing it, subject to the VMEM budget.
        bblk = min(B,
                   max(1, stream_budget // per_b_vmem),
                   max(1, B // min(B, 4)))
        while B % bblk:
            bblk -= 1
        nb = B // bblk

        w1_row = w1_col.T                      # (C, HID)
        b1_row = b1_col.reshape(1, HID)        # (1, HID)
        w2_row = w2_col.T                      # (HID, C)

        feat_spec = pl.BlockSpec((bblk, C, HW), lambda b: (b, 0, 0))
        vmem_limit = int(min(vmem_cap_req,
                             max(16 * 1024 * 1024,
                                 8 * bblk * per_b_vmem + headroom)))
        out_rgb, out_ir = pl.pallas_call(
            _fused_kernel,
            out_shape=out_shape,
            grid_spec=pltpu.PrefetchScalarGridSpec(
                num_scalar_prefetch=0,
                grid=(nb,),
                in_specs=[
                    feat_spec,                                   # rgb
                    feat_spec,                                   # ir
                    pl.BlockSpec((C, HID), lambda b: (0, 0)),    # fused fc1 weight
                    pl.BlockSpec((1, HID), lambda b: (0, 0)),    # fused fc1 bias
                    pl.BlockSpec((HID, C), lambda b: (0, 0)),    # fc2 (rgb-ir diff)
                ],
                out_specs=[feat_spec, feat_spec],
            ),
            compiler_params=pltpu.CompilerParams(
                dimension_semantics=("parallel",),
                vmem_limit_bytes=vmem_limit),
        )(rgb2d, ir2d, w1_row, b1_row, w2_row)
    else:
        # ---------- split (reduce+gate, then apply) path for large maps -----
        d = max(1, min(stream_budget // (_round_up(C, 16) * 128 * elem),
                       HW // 128))
        HWT = 128 * d
        n_sp = pl.cdiv(HW, HWT)
        tile_vmem = _round_up(C, 16) * HWT * elem
        vmem_limit = int(min(vmem_cap_req,
                             max(16 * 1024 * 1024, 8 * tile_vmem + headroom)))

        tile_spec = pl.BlockSpec((pl.Squeezed(), C, HWT), lambda b, s: (b, 0, s))
        gate_spec = pl.BlockSpec((pl.Squeezed(), C, 1), lambda b, s: (b, 0, 0))
        wshape = jax.ShapeDtypeStruct((B, C, 1), jnp.float32)

        wr_arr, wi_arr = pl.pallas_call(
            _make_gate_kernel(C, HWT, HW),
            out_shape=(wshape, wshape),
            grid_spec=pltpu.PrefetchScalarGridSpec(
                num_scalar_prefetch=0,
                grid=(B, n_sp),
                in_specs=[
                    tile_spec, tile_spec,
                    pl.BlockSpec((HID, C), lambda b, s: (0, 0)),
                    pl.BlockSpec((HID, 1), lambda b, s: (0, 0)),
                    pl.BlockSpec((C, HID), lambda b, s: (0, 0)),
                ],
                out_specs=[gate_spec, gate_spec],
                scratch_shapes=[pltpu.VMEM((C, 128), jnp.float32)],
            ),
            compiler_params=pltpu.CompilerParams(
                dimension_semantics=("parallel", "arbitrary"),
                vmem_limit_bytes=vmem_limit),
        )(rgb2d, ir2d, w1_col, b1_col, w2_col)

        out_rgb, out_ir = pl.pallas_call(
            _apply_kernel,
            out_shape=out_shape,
            grid_spec=pltpu.PrefetchScalarGridSpec(
                num_scalar_prefetch=0,
                grid=(B, n_sp),
                in_specs=[gate_spec, gate_spec, tile_spec, tile_spec],
                out_specs=[tile_spec, tile_spec],
            ),
            compiler_params=pltpu.CompilerParams(
                dimension_semantics=("parallel", "parallel"),
                vmem_limit_bytes=vmem_limit),
        )(wr_arr, wi_arr, rgb2d, ir2d)

    return [out_rgb.reshape(B, C, H, W), out_ir.reshape(B, C, H, W)]


def _reference(feat_rgb, feat_ir, w1, bn_scale, bn_shift, w2):
    """Pure-JAX reference mirroring the PyTorch forward (BN in eval mode)."""
    B, C, H, W = feat_rgb.shape
    diff = feat_rgb - feat_ir
    gap = jnp.mean(diff, axis=(2, 3))                                    # (B, C)
    h = gap @ w1.T                                                       # (B, HID)
    h = jnp.maximum(h * bn_scale[None, :] + bn_shift[None, :], 0.0)
    z = (h @ w2.T).reshape(B, 2, C)                                      # (B, 2, C)
    wgt = jax.nn.softmax(z, axis=1)                                      # pair softmax
    wr = wgt[:, 0, :].reshape(B, C, 1, 1)
    wi = wgt[:, 1, :].reshape(B, C, 1, 1)
    return [wr * feat_rgb, wi * feat_ir]


if __name__ == "__main__":
    def run_case(name, B, C, H, W, scale, **kwargs):
        HID = max(1, C // scale)
        key = jax.random.PRNGKey(0)
        ks = jax.random.split(key, 8)
        feat_rgb = jax.random.normal(ks[0], (B, C, H, W), dtype=jnp.float32)
        feat_ir = jax.random.normal(ks[1], (B, C, H, W), dtype=jnp.float32)
        w1 = jax.random.normal(ks[2], (HID, C), dtype=jnp.float32) * 0.1
        w2 = jax.random.normal(ks[3], (2 * C, HID), dtype=jnp.float32) * 0.1
        gamma = 1.0 + 0.1 * jax.random.normal(ks[4], (HID,), dtype=jnp.float32)
        beta = 0.1 * jax.random.normal(ks[5], (HID,), dtype=jnp.float32)
        running_mean = 0.1 * jax.random.normal(ks[6], (HID,), dtype=jnp.float32)
        running_var = 1.0 + 0.1 * jax.random.uniform(ks[7], (HID,), dtype=jnp.float32)
        eps = 1e-5
        bn_scale = gamma / jnp.sqrt(running_var + eps)
        bn_shift = beta - running_mean * bn_scale

        out = rgbt_diff_enhancive(feat_rgb, feat_ir, w1, bn_scale, bn_shift, w2,
                                  **kwargs)
        out = [jax.block_until_ready(o) for o in out]
        ref = _reference(feat_rgb, feat_ir, w1, bn_scale, bn_shift, w2)
        for o, r in zip(out, ref):
            assert o.shape == r.shape, f"{name}: shape {o.shape} vs {r.shape}"
            err = float(jnp.max(jnp.abs(o - r)))
            assert err < 5e-5, f"{name}: max abs err {err}"

    # 1) Fused path (H*W multiple of 128; grid has B steps for pipelining).
    run_case("fused", B=2, C=64, H=16, W=16, scale=16)
    # 2) Fused path with ragged spatial size (no host pad/slice any more).
    run_case("fused_ragged", B=2, C=64, H=10, W=10, scale=16)
    # 3) Split (reduce+gate, then apply) path forced via a tiny block budget.
    run_case("split", B=2, C=64, H=16, W=16, scale=16,
             block_budget_bytes=32 * 1024)
    # 4) Split path with a ragged last spatial tile (exercises in-kernel mask).
    run_case("split_ragged", B=2, C=64, H=10, W=13, scale=16,
             block_budget_bytes=32 * 1024)

    print("KERNEL_OK")
</pallas_src>

<mosaic_0001>
module attributes {stable_mosaic.version = 11 : i64} {
  func.func @_fused_kernel(%arg0: i32, %arg1: memref<1x64x256xf32, #tpu.memory_space<vmem>>, %arg2: memref<1x64x256xf32, #tpu.memory_space<vmem>>, %arg3: memref<64x4xf32, #tpu.memory_space<vmem>>, %arg4: memref<1x4xf32, #tpu.memory_space<vmem>>, %arg5: memref<4x64xf32, #tpu.memory_space<vmem>>, %arg6: memref<1x64x256xf32, #tpu.memory_space<vmem>>, %arg7: memref<1x64x256xf32, #tpu.memory_space<vmem>>) attributes {dimension_semantics = [#tpu.dimension_semantics<parallel>], iteration_bounds = array<i64: 2>, scalar_prefetch = 0 : i64, scratch_operands = 0 : i64, tpu.core_type = #tpu.core_type<tc>, window_params = [{transform_indices = @transform_0, window_bounds = array<i64: 1, 64, 256>}, {transform_indices = @transform_1, window_bounds = array<i64: 1, 64, 256>}, {pipeline_mode = #tpu.pipeline_mode<synchronous>, transform_indices = @transform_2, window_bounds = array<i64: 64, 4>}, {pipeline_mode = #tpu.pipeline_mode<synchronous>, transform_indices = @transform_3, window_bounds = array<i64: 1, 4>}, {pipeline_mode = #tpu.pipeline_mode<synchronous>, transform_indices = @transform_4, window_bounds = array<i64: 4, 64>}, {transform_indices = @transform_5, window_bounds = array<i64: 1, 64, 256>}, {transform_indices = @transform_6, window_bounds = array<i64: 1, 64, 256>}]} {
    %c0 = arith.constant 0 : index
    %c0_0 = arith.constant 0 : index
    %c0_1 = arith.constant 0 : index
    %0 = vector.load %arg1[%c0, %c0_0, %c0_1] : memref<1x64x256xf32, #tpu.memory_space<vmem>>, vector<1x64x256xf32>
    %c0_2 = arith.constant 0 : index
    %c0_3 = arith.constant 0 : index
    %c0_4 = arith.constant 0 : index
    %1 = vector.load %arg2[%c0_2, %c0_3, %c0_4] : memref<1x64x256xf32, #tpu.memory_space<vmem>>, vector<1x64x256xf32>
    %2 = arith.subf %0, %1 : vector<1x64x256xf32>
    %cst = arith.constant dense<0.000000e+00> : vector<1x64xf32>
    %3 = vector.multi_reduction <add>, %2, %cst [2] : vector<1x64x256xf32> to vector<1x64xf32>
    %c0_5 = arith.constant 0 : index
    %c0_6 = arith.constant 0 : index
    %4 = vector.load %arg3[%c0_5, %c0_6] : memref<64x4xf32, #tpu.memory_space<vmem>>, vector<64x4xf32>
    %cst_7 = arith.constant dense<0.000000e+00> : vector<1x4xf32>
    %5 = tpu.matmul %3, %4, %cst_7 {dimension_numbers = #tpu.dot_dimension_numbers<[1], [0], [0], [1], [0, 0, 1, 1], [], []>} : vector<1x64xf32>, vector<64x4xf32>, vector<1x4xf32> -> vector<1x4xf32>
    %c0_8 = arith.constant 0 : index
    %c0_9 = arith.constant 0 : index
    %6 = vector.load %arg4[%c0_8, %c0_9] : memref<1x4xf32, #tpu.memory_space<vmem>>, vector<1x4xf32>
    %7 = arith.addf %5, %6 : vector<1x4xf32>
    %cst_10 = arith.constant 0.000000e+00 : f32
    %8 = vector.broadcast %cst_10 : f32 to vector<1x4xf32>
    %9 = arith.maximumf %7, %8 : vector<1x4xf32>
    %c0_11 = arith.constant 0 : index
    %c0_12 = arith.constant 0 : index
    %10 = vector.load %arg5[%c0_11, %c0_12] : memref<4x64xf32, #tpu.memory_space<vmem>>, vector<4x64xf32>
    %cst_13 = arith.constant dense<0.000000e+00> : vector<1x64xf32>
    %11 = tpu.matmul %9, %10, %cst_13 {dimension_numbers = #tpu.dot_dimension_numbers<[1], [0], [0], [1], [0, 0, 1, 1], [], []>} : vector<1x4xf32>, vector<4x64xf32>, vector<1x64xf32> -> vector<1x64xf32>
    %cst_14 = arith.constant 0.000000e+00 : f32
    %12 = vector.broadcast %cst_14 : f32 to vector<1x64xf32>
    %13 = arith.subf %12, %11 : vector<1x64xf32>
    %14 = math.exp %13 : vector<1x64xf32>
    %cst_15 = arith.constant 1.000000e+00 : f32
    %15 = vector.broadcast %cst_15 : f32 to vector<1x64xf32>
    %16 = arith.addf %15, %14 : vector<1x64xf32>
    %17 = tpu.reciprocal %16 : vector<1x64xf32> -> vector<1x64xf32>
    %cst_16 = arith.constant 1.000000e+00 : f32
    %18 = vector.broadcast %cst_16 : f32 to vector<1x64xf32>
    %19 = arith.subf %18, %17 : vector<1x64xf32>
    %20 = vector.shape_cast %17 : vector<1x64xf32> to vector<1x64x1xf32>
    %21 = vector.broadcast %20 : vector<1x64x1xf32> to vector<1x64x256xf32>
    %22 = arith.mulf %21, %0 : vector<1x64x256xf32>
    %c0_17 = arith.constant 0 : index
    %c0_18 = arith.constant 0 : index
    %c0_19 = arith.constant 0 : index
    %23 = vector.load %arg6[%c0_17, %c0_18, %c0_19] : memref<1x64x256xf32, #tpu.memory_space<vmem>>, vector<1x64x256xf32>
    tpu.vector_store %arg6[%c0_17, %c0_18, %c0_19], %22 {strides = array<i32>} : memref<1x64x256xf32, #tpu.memory_space<vmem>>, vector<1x64x256xf32>,
    %24 = vector.shape_cast %19 : vector<1x64xf32> to vector<1x64x1xf32>
    %25 = vector.broadcast %24 : vector<1x64x1xf32> to vector<1x64x256xf32>
    %26 = arith.mulf %25, %1 : vector<1x64x256xf32>
    %c0_20 = arith.constant 0 : index
    %c0_21 = arith.constant 0 : index
    %c0_22 = arith.constant 0 : index
    %27 = vector.load %arg7[%c0_20, %c0_21, %c0_22] : memref<1x64x256xf32, #tpu.memory_space<vmem>>, vector<1x64x256xf32>
    tpu.vector_store %arg7[%c0_20, %c0_21, %c0_22], %26 {strides = array<i32>} : memref<1x64x256xf32, #tpu.memory_space<vmem>>, vector<1x64x256xf32>,
    return
  }
  func.func @transform_0(%arg0: i32) -> (i32, i32, i32) {
    %c0_i32 = arith.constant 0 : i32
    %c0_i32_0 = arith.constant 0 : i32
    %c0_i32_1 = arith.constant 0 : i32
    return %arg0, %c0_i32, %c0_i32_0 : i32, i32, i32
  }
  func.func @transform_1(%arg0: i32) -> (i32, i32, i32) {
    %c0_i32 = arith.constant 0 : i32
    %c0_i32_0 = arith.constant 0 : i32
    %c0_i32_1 = arith.constant 0 : i32
    return %arg0, %c0_i32, %c0_i32_0 : i32, i32, i32
  }
  func.func @transform_2(%arg0: i32) -> (i32, i32) {
    %c0_i32 = arith.constant 0 : i32
    %c0_i32_0 = arith.constant 0 : i32
    %c0_i32_1 = arith.constant 0 : i32
    return %c0_i32, %c0_i32_0 : i32, i32
  }
  func.func @transform_3(%arg0: i32) -> (i32, i32) {
    %c0_i32 = arith.constant 0 : i32
    %c0_i32_0 = arith.constant 0 : i32
    %c0_i32_1 = arith.constant 0 : i32
    return %c0_i32, %c0_i32_0 : i32, i32
  }
  func.func @transform_4(%arg0: i32) -> (i32, i32) {
    %c0_i32 = arith.constant 0 : i32
    %c0_i32_0 = arith.constant 0 : i32
    %c0_i32_1 = arith.constant 0 : i32
    return %c0_i32, %c0_i32_0 : i32, i32
  }
  func.func @transform_5(%arg0: i32) -> (i32, i32, i32) {
    %c0_i32 = arith.constant 0 : i32
    %c0_i32_0 = arith.constant 0 : i32
    %c0_i32_1 = arith.constant 0 : i32
    return %arg0, %c0_i32, %c0_i32_0 : i32, i32, i32
  }
  func.func @transform_6(%arg0: i32) -> (i32, i32, i32) {
    %c0_i32 = arith.constant 0 : i32
    %c0_i32_0 = arith.constant 0 : i32
    %c0_i32_1 = arith.constant 0 : i32
    return %arg0, %c0_i32, %c0_i32_0 : i32, i32, i32
  }
}

</mosaic_0001>

<llo_original>
// kernel: tpu_custom_call.1
$region0: #{tpu_custom_call.1}
  #allocation0 [shape = 'u32[]', space=smem, size = 0x4, offset = 0x4, fixed_abs, tag = 'smem constant byte address 0x4 - core index']
  #allocation1 [shape = 'u32[144,128]{1,0:T(1,128)}', space=vmem, size = 0x12000, scoped, tag = 'internal scratch']
  %s0 = inlined_call_operand.hbm [shape: f32[2,64,256], index: 0, kind: input, shape index: {}]
  %s1 = inlined_call_operand.hbm [shape: f32[2,64,256], index: 1, kind: input, shape index: {}]
  %s2 = inlined_call_operand.vmem [shape: f32[64,4], index: 2, kind: input, shape index: {}]
  %s3 = inlined_call_operand.vmem [shape: f32[1,4], index: 3, kind: input, shape index: {}]
  %s4 = inlined_call_operand.vmem [shape: f32[4,64], index: 4, kind: input, shape index: {}]
  %s5 = inlined_call_operand.hbm [shape: f32[2,64,256], index: 5, kind: output, shape index: {0}]
  %s6 = inlined_call_operand.hbm [shape: f32[2,64,256], index: 6, kind: output, shape index: {1}]
  %7 = xla_tuple %s5, %s6
  %s8 = sld [smem:[#allocation0]]
  $region69: #{tpu_custom_call.1} parent=0
    _
  %s10 = ssub.s32 1, %s8
  %s11 = scalar_select 0, %s10, %s8
  $region1: #{tpu_custom_call.1} parent=0
    #allocation2 [shape = 'u8[131072]{0}', space=vmem, size = 0x20000, scoped, tag = 'input window, operand 0']
    #allocation3 [shape = 's32[2]{0}', space=sflag, size = 0x8, scoped, tag = 'scoped memory for tpu_custom_call.1']
    #allocation4 [shape = 's32[2]{0}', space=sflag, size = 0x8, scoped, tag = 'scoped memory for tpu_custom_call.1']
    #allocation5 [shape = 'u8[131072]{0}', space=vmem, size = 0x20000, scoped, tag = 'input window, operand 1']
    #allocation6 [shape = 's32[2]{0}', space=sflag, size = 0x8, scoped, tag = 'scoped memory for tpu_custom_call.1']
    #allocation7 [shape = 'u8[131072]{0}', space=vmem, size = 0x20000, scoped, tag = 'output window, operand 0']
    #allocation8 [shape = 'u8[131072]{0}', space=vmem, size = 0x20000, scoped, tag = 'output window, operand 1']
    #allocation9 [shape = 's32[2]{0}', space=sflag, size = 0x8, scoped, tag = 'scoped memory for tpu_custom_call.1']
    %12 = vsyncpa [#allocation3], 0
    %s13 = scalar_lea.sflag [#allocation3], 1
    %14 = vsyncpa %s13, 0
    %15 = vsyncpa [#allocation6], 0
    %s16 = scalar_lea.sflag [#allocation6], 1
    %17 = vsyncpa %s16, 0
    %18 = vsyncpa [#allocation4], 0
    %s19 = scalar_lea.sflag [#allocation4], 1
    %20 = vsyncpa %s19, 0
    %21 = vsyncpa [#allocation9], 0
    %s22 = scalar_lea.sflag [#allocation9], 1
    %23 = vsyncpa %s22, 0
    loop: start=0, step=1, limit=4
    $region2: #{tpu_custom_call.1} parent=1 // loop_pre_header
      _
    $region3: #{tpu_custom_call.1} parent=1 // loop_header
      %s25 = sphi 0, %s29
      %p26 = scmp.ge.s32.totalorder %s25, 4
      %s35 = sphi 0, %s37
      %s38 = sphi 0, %s35
      %s39 = sphi 0, %s38
      %s55 = sphi 0, %s39
      %s61 = sphi 0, %s63
      %s64 = sphi 0, %s61
      %s65 = sphi 0, %s64
      %s81 = sphi 0, %s65
      %s85 = sphi 0, %s85
      %s87 = sphi 0, %s85
      %s88 = sphi 0, %s87
      %s102 = sphi 0, %s88
      %s106 = sphi 0, %s106
      %s108 = sphi 0, %s106
      %s109 = sphi 0, %s108
      %s123 = sphi 0, %s109
      %s127 = sphi 0, %s127
      %s129 = sphi 0, %s127
      %s130 = sphi 0, %s129
      %s144 = sphi 0, %s130
      %s150 = sphi 0, %s152
      %s153 = sphi 0, %s150
      %s154 = sphi 0, %s153
      %s170 = sphi 0, %s154
      %s176 = sphi 0, %s178
      %s179 = sphi 0, %s176
      %s180 = sphi 0, %s179
      %s196 = sphi 0, %s180
    $region4: #{tpu_custom_call.1} parent=1 // loop_header_branch
      %28 = sbr.rel (%p26) target = $region8
    $region5: #{tpu_custom_call.1} parent=1 // loop_body
      %s30 = ssub.s32 %s25, 1
      %s31 = ssub.s32 %s25, 2
      %s32 = sadd.s32 %s25, 1
      %s33 = ssub.s32 %s25, %s32
      %p34 = scmp.eq.s32.totalorder %s33, 0
      %s36 = sadd.s32 %s35, 1
      %s37 = scalar_select %p34, %s35, %s36
      %p40 = pneg %p34
      %p41 = scmp.eq.s32.totalorder %s25, 1
      %p42 = por %p40, %p41
      %p43 = scmp.ne.s32.totalorder %s35, %s38
      %p44 = scmp.eq.s32.totalorder %s25, 0
      %p45 = por %p43, %p44
      %p46 = scmp.ne.s32.totalorder %s35, %s38
      %p47 = scmp.eq.s32.totalorder %s30, 1
      %p48 = por %p46, %p47
      %p49 = scmp.ne.s32.totalorder %s38, %s39
      %p50 = scmp.eq.s32.totalorder %s30, 0
      %p51 = por %p49, %p50
      %p52 = scmp.ne.s32.totalorder %s38, %s39
      %p53 = scmp.eq.s32.totalorder %s31, 1
      %p54 = por %p52, %p53
      %p56 = scmp.ne.s32.totalorder %s39, %s55
      %p57 = scmp.eq.s32.totalorder %s31, 0
      %p58 = por %p56, %p57
      %s59 = ssub.s32 %s25, %s32
      %p60 = scmp.eq.s32.totalorder %s59, 0
      %s62 = sadd.s32 %s61, 1
      %s63 = scalar_select %p60, %s61, %s62
      %p66 = pneg %p60
      %p67 = scmp.eq.s32.totalorder %s25, 1
      %p68 = por %p66, %p67
      %p69 = scmp.ne.s32.totalorder %s61, %s64
      %p70 = scmp.eq.s32.totalorder %s25, 0
      %p71 = por %p69, %p70
      %p72 = scmp.ne.s32.totalorder %s61, %s64
      %p73 = scmp.eq.s32.totalorder %s30, 1
      %p74 = por %p72, %p73
      %p75 = scmp.ne.s32.totalorder %s64, %s65
      %p76 = scmp.eq.s32.totalorder %s30, 0
      %p77 = por %p75, %p76
      %p78 = scmp.ne.s32.totalorder %s64, %s65
      %p79 = scmp.eq.s32.totalorder %s31, 1
      %p80 = por %p78, %p79
      %p82 = scmp.ne.s32.totalorder %s65, %s81
      %p83 = scmp.eq.s32.totalorder %s31, 0
      %p84 = por %p82, %p83
      %s86 = sadd.s32 %s85, 1
      %p89 = scmp.eq.s32.totalorder %s25, 1
      %p90 = scmp.ne.s32.totalorder %s85, %s87
      %p91 = scmp.eq.s32.totalorder %s25, 0
      %p92 = por %p90, %p91
      %p93 = scmp.ne.s32.totalorder %s85, %s87
      %p94 = scmp.eq.s32.totalorder %s30, 1
      %p95 = por %p93, %p94
      %p96 = scmp.ne.s32.totalorder %s87, %s88
      %p97 = scmp.eq.s32.totalorder %s30, 0
      %p98 = por %p96, %p97
      %p99 = scmp.ne.s32.totalorder %s87, %s88
      %p100 = scmp.eq.s32.totalorder %s31, 1
      %p101 = por %p99, %p100
      %p103 = scmp.ne.s32.totalorder %s88, %s102
      %p104 = scmp.eq.s32.totalorder %s31, 0
      %p105 = por %p103, %p104
      %s107 = sadd.s32 %s106, 1
      %p110 = scmp.eq.s32.totalorder %s25, 1
      %p111 = scmp.ne.s32.totalorder %s106, %s108
      %p112 = scmp.eq.s32.totalorder %s25, 0
      %p113 = por %p111, %p112
      %p114 = scmp.ne.s32.totalorder %s106, %s108
      %p115 = scmp.eq.s32.totalorder %s30, 1
      %p116 = por %p114, %p115
      %p117 = scmp.ne.s32.totalorder %s108, %s109
      %p118 = scmp.eq.s32.totalorder %s30, 0
      %p119 = por %p117, %p118
      %p120 = scmp.ne.s32.totalorder %s108, %s109
      %p121 = scmp.eq.s32.totalorder %s31, 1
      %p122 = por %p120, %p121
      %p124 = scmp.ne.s32.totalorder %s109, %s123
      %p125 = scmp.eq.s32.totalorder %s31, 0
      %p126 = por %p124, %p125
      %s128 = sadd.s32 %s127, 1
      %p131 = scmp.eq.s32.totalorder %s25, 1
      %p132 = scmp.ne.s32.totalorder %s127, %s129
      %p133 = scmp.eq.s32.totalorder %s25, 0
      %p134 = por %p132, %p133
      %p135 = scmp.ne.s32.totalorder %s127, %s129
      %p136 = scmp.eq.s32.totalorder %s30, 1
      %p137 = por %p135, %p136
      %p138 = scmp.ne.s32.totalorder %s129, %s130
      %p139 = scmp.eq.s32.totalorder %s30, 0
      %p140 = por %p138, %p139
      %p141 = scmp.ne.s32.totalorder %s129, %s130
      %p142 = scmp.eq.s32.totalorder %s31, 1
      %p143 = por %p141, %p142
      %p145 = scmp.ne.s32.totalorder %s130, %s144
      %p146 = scmp.eq.s32.totalorder %s31, 0
      %p147 = por %p145, %p146
      %s148 = ssub.s32 %s25, %s32
      %p149 = scmp.eq.s32.totalorder %s148, 0
      %s151 = sadd.s32 %s150, 1
      %s152 = scalar_select %p149, %s150, %s151
      %p155 = pneg %p149
      %p156 = scmp.eq.s32.totalorder %s25, 1
      %p157 = por %p155, %p156
      %p158 = scmp.ne.s32.totalorder %s150, %s153
      %p159 = scmp.eq.s32.totalorder %s25, 0
      %p160 = por %p158, %p159
      %p161 = scmp.ne.s32.totalorder %s150, %s153
      %p162 = scmp.eq.s32.totalorder %s30, 1
      %p163 = por %p161, %p162
      %p164 = scmp.ne.s32.totalorder %s153, %s154
      %p165 = scmp.eq.s32.totalorder %s30, 0
      %p166 = por %p164, %p165
      %p167 = scmp.ne.s32.totalorder %s153, %s154
      %p168 = scmp.eq.s32.totalorder %s31, 1
      %p169 = por %p167, %p168
      %p171 = scmp.ne.s32.totalorder %s154, %s170
      %p172 = scmp.eq.s32.totalorder %s31, 0
      %p173 = por %p171, %p172
      %s174 = ssub.s32 %s25, %s32
      %p175 = scmp.eq.s32.totalorder %s174, 0
      %s177 = sadd.s32 %s176, 1
      %s178 = scalar_select %p175, %s176, %s177
      %p181 = pneg %p175
      %p182 = scmp.eq.s32.totalorder %s25, 1
      %p183 = por %p181, %p182
      %p184 = scmp.ne.s32.totalorder %s176, %s179
      %p185 = scmp.eq.s32.totalorder %s25, 0
      %p186 = por %p184, %p185
      %p187 = scmp.ne.s32.totalorder %s176, %s179
      %p188 = scmp.eq.s32.totalorder %s30, 1
      %p189 = por %p187, %p188
      %p190 = scmp.ne.s32.totalorder %s179, %s180
      %p191 = scmp.eq.s32.totalorder %s30, 0
      %p192 = por %p190, %p191
      %p193 = scmp.ne.s32.totalorder %s179, %s180
      %p194 = scmp.eq.s32.totalorder %s31, 1
      %p195 = por %p193, %p194
      %p197 = scmp.ne.s32.totalorder %s180, %s196
      %p198 = scmp.eq.s32.totalorder %s31, 0
      %p199 = por %p197, %p198
      %p200 = scmp.le.s32.totalorder 1, %s25
      %p201 = scmp.lt.s32.totalorder %s25, 3
      %p202 = pnand %p200, %p201
      %p203 = pneg %p202
      // Predicated region
      $region9: #{tpu_custom_call.1} parent=5 // pred_check
        _
      $region10: #{tpu_custom_call.1} parent=5 // pred_check_branch
        %205 = sbr.rel (%p202) target = $region12
      $region11: #{tpu_custom_call.1} parent=5 // pred_region
        %s206 = ssub.s32 %s25, 1
        // Predicated region
        $region13: #{tpu_custom_call.1} parent=11 // pred_check
          %p207 = pneg %p98
        $region14: #{tpu_custom_call.1} parent=11 // pred_check_branch
          %209 = sbr.rel (%p207) target = $region16
        $region15: #{tpu_custom_call.1} parent=11 // pred_region
          _
        $region16: #{tpu_custom_call.1} parent=11 // pred_fallthru
          _
        // Predicated region
        $region17: #{tpu_custom_call.1} parent=11 // pred_check
          %p210 = pneg %p119
        $region18: #{tpu_custom_call.1} parent=11 // pred_check_branch
          %212 = sbr.rel (%p210) target = $region20
        $region19: #{tpu_custom_call.1} parent=11 // pred_region
          _
        $region20: #{tpu_custom_call.1} parent=11 // pred_fallthru
          _
        // Predicated region
        $region21: #{tpu_custom_call.1} parent=11 // pred_check
          %p213 = pneg %p140
        $region22: #{tpu_custom_call.1} parent=11 // pred_check_branch
          %215 = sbr.rel (%p213) target = $region24
        $region23: #{tpu_custom_call.1} parent=11 // pred_region
          _
        $region24: #{tpu_custom_call.1} parent=11 // pred_fallthru
          _
      $region12: #{tpu_custom_call.1} parent=5 // pred_fallthru
        _
      %p216 = scmp.lt.s32.totalorder %s25, 2
      // Predicated region
      $region25: #{tpu_custom_call.1} parent=5 // pred_check
        %p217 = pneg %p216
      $region26: #{tpu_custom_call.1} parent=5 // pred_check_branch
        %219 = sbr.rel (%p217) target = $region28
      $region27: #{tpu_custom_call.1} parent=5 // pred_region
        // Predicated region
        $region29: #{tpu_custom_call.1} parent=27 // pred_check
          %p220 = pneg %p45
        $region30: #{tpu_custom_call.1} parent=27 // pred_check_branch
          %222 = sbr.rel (%p220) target = $region32
        $region31: #{tpu_custom_call.1} parent=27 // pred_region
          %s223 = sand.u32 %s35, 1
          %s224 = scalar_lea.sflag [#allocation3], %s223
          %s225 = sand.u32 %s35, 1
          %s226 = smul.addr %s225, 128
          %s227 = scalar_lea.vmem [#allocation2], %s226
          %s229 = ssub.s32 2048, 2048
          %230 = vsyncadd %s224, %s229
          %s231 = smul.addr %s25, 16
          %s232 = smul.addr %s231, 128
          %s233 = scalar_lea.hbm %s0, %s232
          %s234 = sshll.u32 %s227, 4
          %s235 = int_to_ptr.vmem [resolvable:$true] %s234
          %240 = dma.hbm_to_vmem [thread:$0]  %s233, 2048, %s235, %s224, 256, 256, 16
        $region32: #{tpu_custom_call.1} parent=27 // pred_fallthru
          _
        // Predicated region
        $region33: #{tpu_custom_call.1} parent=27 // pred_check
          %p241 = pneg %p71
        $region34: #{tpu_custom_call.1} parent=27 // pred_check_branch
          %243 = sbr.rel (%p241) target = $region36
        $region35: #{tpu_custom_call.1} parent=27 // pred_region
          %s244 = sand.u32 %s61, 1
          %s245 = scalar_lea.sflag [#allocation6], %s244
          %s246 = sand.u32 %s61, 1
          %s247 = smul.addr %s246, 128
          %s248 = scalar_lea.vmem [#allocation5], %s247
          %s250 = ssub.s32 2048, 2048
          %251 = vsyncadd %s245, %s250
          %s252 = smul.addr %s25, 16
          %s253 = smul.addr %s252, 128
          %s254 = scalar_lea.hbm %s1, %s253
          %s255 = sshll.u32 %s248, 4
          %s256 = int_to_ptr.vmem [resolvable:$true] %s255
          %261 = dma.hbm_to_vmem [thread:$0]  %s254, 2048, %s256, %s245, 256, 256, 16
        $region36: #{tpu_custom_call.1} parent=27 // pred_fallthru
          _
      $region28: #{tpu_custom_call.1} parent=5 // pred_fallthru
        _
      %p262 = scmp.le.s32.totalorder 1, %s25
      %p263 = scmp.lt.s32.totalorder %s25, 3
      %p264 = pnand %p262, %p263
      %p265 = pneg %p264
      // Predicated region
      $region37: #{tpu_custom_call.1} parent=5 // pred_check
        _
      $region38: #{tpu_custom_call.1} parent=5 // pred_check_branch
        %267 = sbr.rel (%p264) target = $region40
      $region39: #{tpu_custom_call.1} parent=5 // pred_region
        %s268 = ssub.s32 %s25, 1
        %s269 = sand.u32 %s38, 1
        %s270 = scalar_lea.sflag [#allocation3], %s269
        %s271 = sand.u32 %s38, 1
        %s272 = smul.addr %s271, 128
        %s273 = scalar_lea.vmem [#allocation2], %s272
        // Predicated region
        $region41: #{tpu_custom_call.1} parent=39 // pred_check
          %p274 = pneg %p51
        $region42: #{tpu_custom_call.1} parent=39 // pred_check_branch
          %276 = sbr.rel (%p274) target = $region44
        $region43: #{tpu_custom_call.1} parent=39 // pred_region
          %277 = dma.done %s270, 2048
        $region44: #{tpu_custom_call.1} parent=39 // pred_fallthru
          _
        %s278 = sand.u32 %s64, 1
        %s279 = scalar_lea.sflag [#allocation6], %s278
        %s280 = sand.u32 %s64, 1
        %s281 = smul.addr %s280, 128
        %s282 = scalar_lea.vmem [#allocation5], %s281
        // Predicated region
        $region45: #{tpu_custom_call.1} parent=39 // pred_check
          %p283 = pneg %p77
        $region46: #{tpu_custom_call.1} parent=39 // pred_check_branch
          %285 = sbr.rel (%p283) target = $region48
        $region47: #{tpu_custom_call.1} parent=39 // pred_region
          %286 = dma.done %s279, 2048
        $region48: #{tpu_custom_call.1} parent=39 // pred_fallthru
          _
        %s287 = sand.u32 %s38, 1
        %s288 = scalar_lea.sflag [#allocation3], %s287
        %s289 = sand.u32 %s38, 1
        %s290 = smul.addr %s289, 128
        %s291 = scalar_lea.vmem [#allocation2], %s290
        %p292 = pneg %p51
        %p293 = pneg %p48
        %s294 = sand.u32 %s64, 1
        %s295 = scalar_lea.sflag [#allocation6], %s294
        %s296 = sand.u32 %s64, 1
        %s297 = smul.addr %s296, 128
        %s298 = scalar_lea.vmem [#allocation5], %s297
        %p299 = pneg %p77
        %p300 = pneg %p74
        %p301 = pneg %p98
        %p302 = pneg %p95
        %p303 = pneg %p119
        %p304 = pneg %p116
        %p305 = pneg %p140
        %p306 = pneg %p137
        %p307 = pneg %p166
        %p308 = pneg %p163
        %s309 = sand.u32 %s153, 1
        %s310 = scalar_lea.sflag [#allocation4], %s309
        %s311 = sand.u32 %s153, 1
        %s312 = smul.addr %s311, 128
        %s313 = scalar_lea.vmem [#allocation7], %s312
        %p314 = pneg %p192
        %p315 = pneg %p189
        %s316 = sand.u32 %s179, 1
        %s317 = scalar_lea.sflag [#allocation9], %s316
        %s318 = sand.u32 %s179, 1
        %s319 = smul.addr %s318, 128
        %s320 = scalar_lea.vmem [#allocation8], %s319
        %v321 = vld [vmem:[%s273] sm:$0xff]
        %v322 = vld [vmem:[%s273 + $0x8] sm:$0xff]
        %v323 = vld [vmem:[%s273 + $0x10] sm:$0xff]
        %v324 = vld [vmem:[%s273 + $0x18] sm:$0xff]
        %v325 = vld [vmem:[%s273 + $0x20] sm:$0xff]
        %v326 = vld [vmem:[%s273 + $0x28] sm:$0xff]
        %v327 = vld [vmem:[%s273 + $0x30] sm:$0xff]
        %v328 = vld [vmem:[%s273 + $0x38] sm:$0xff]
        %v329 = vld [vmem:[%s273 + $0x40] sm:$0xff]
        %v330 = vld [vmem:[%s273 + $0x48] sm:$0xff]
        %v331 = vld [vmem:[%s273 + $0x50] sm:$0xff]
        %v332 = vld [vmem:[%s273 + $0x58] sm:$0xff]
        %v333 = vld [vmem:[%s273 + $0x60] sm:$0xff]
        %v334 = vld [vmem:[%s273 + $0x68] sm:$0xff]
        %v335 = vld [vmem:[%s273 + $0x70] sm:$0xff]
        %v336 = vld [vmem:[%s273 + $0x78] sm:$0xff]
        %v337 = vld [vmem:[%s282] sm:$0xff]
        %v338 = vld [vmem:[%s282 + $0x8] sm:$0xff]
        %v339 = vld [vmem:[%s282 + $0x10] sm:$0xff]
        %v340 = vld [vmem:[%s282 + $0x18] sm:$0xff]
        %v341 = vld [vmem:[%s282 + $0x20] sm:$0xff]
        %v342 = vld [vmem:[%s282 + $0x28] sm:$0xff]
        %v343 = vld [vmem:[%s282 + $0x30] sm:$0xff]
        %v344 = vld [vmem:[%s282 + $0x38] sm:$0xff]
        %v345 = vld [vmem:[%s282 + $0x40] sm:$0xff]
        %v346 = vld [vmem:[%s282 + $0x48] sm:$0xff]
        %v347 = vld [vmem:[%s282 + $0x50] sm:$0xff]
        %v348 = vld [vmem:[%s282 + $0x58] sm:$0xff]
        %v349 = vld [vmem:[%s282 + $0x60] sm:$0xff]
        %v350 = vld [vmem:[%s282 + $0x68] sm:$0xff]
        %v351 = vld [vmem:[%s282 + $0x70] sm:$0xff]
        %v352 = vld [vmem:[%s282 + $0x78] sm:$0xff]
        %v353 = vsub.f32 %v321, %v337
        %v354 = vsub.f32 %v322, %v338
        %v355 = vsub.f32 %v323, %v339
        %v356 = vsub.f32 %v324, %v340
        %v357 = vsub.f32 %v325, %v341
        %v358 = vsub.f32 %v326, %v342
        %v359 = vsub.f32 %v327, %v343
        %v360 = vsub.f32 %v328, %v344
        %v361 = vsub.f32 %v329, %v345
        %v362 = vsub.f32 %v330, %v346
        %v363 = vsub.f32 %v331, %v347
        %v364 = vsub.f32 %v332, %v348
        %v365 = vsub.f32 %v333, %v349
        %v366 = vsub.f32 %v334, %v350
        %v367 = vsub.f32 %v335, %v351
        %v368 = vsub.f32 %v336, %v352
        %v369 = vadd.f32 %v353, %v354
        %370 = vadd.xlane.f32.xlu0 %v369
        %v371 = vpop.xlane.xlu0 %370
        %v372 = vadd.f32 %v355, %v356
        %373 = vadd.xlane.f32.xlu0 %v372
        %v374 = vpop.xlane.xlu0 %373
        %v375 = vadd.f32 %v357, %v358
        %376 = vadd.xlane.f32.xlu0 %v375
        %v377 = vpop.xlane.xlu0 %376
        %v378 = vadd.f32 %v359, %v360
        %379 = vadd.xlane.f32.xlu0 %v378
        %v380 = vpop.xlane.xlu0 %379
        %v381 = vadd.f32 %v361, %v362
        %382 = vadd.xlane.f32.xlu0 %v381
        %v383 = vpop.xlane.xlu0 %382
        %v384 = vadd.f32 %v363, %v364
        %385 = vadd.xlane.f32.xlu0 %v384
        %v386 = vpop.xlane.xlu0 %385
        %v387 = vadd.f32 %v365, %v366
        %388 = vadd.xlane.f32.xlu0 %v387
        %v389 = vpop.xlane.xlu0 %388
        %v390 = vadd.f32 %v367, %v368
        %391 = vadd.xlane.f32.xlu0 %v390
        %v392 = vpop.xlane.xlu0 %391
        %v393 = vld [vmem:[%s2] sm:$0xff]
        %v394 = vld [vmem:[%s2 + $0x8] sm:$0xff]
        %v395 = vld [vmem:[%s2 + $0x10] sm:$0xff]
        %v396 = vld [vmem:[%s2 + $0x18] sm:$0xff]
        %v397 = vld [vmem:[%s2 + $0x20] sm:$0xff]
        %v398 = vld [vmem:[%s2 + $0x28] sm:$0xff]
        %v399 = vld [vmem:[%s2 + $0x30] sm:$0xff]
        %v400 = vld [vmem:[%s2 + $0x38] sm:$0xff]
        %v401 = vld [vmem:[%s3] sm:$0x1]
        %v410 = vlaneseq
        %v411 = vand.u32 %v410, 127
        %v412 = vlaneseq
        %v413 = vshrl.u32 %v412, 7
        %v414 = vsub.s32 %v411, %v413
        %v415 = vrot.slane %v371, %v414
        %v416 = vadd.s32 %v411, 4294967288
        %v417 = vlaneseq
        %v418 = vshrl.u32 %v417, 7
        %v419 = vsub.s32 %v416, %v418
        %v420 = vrot.slane %v374, %v419
        %vm421 = vcmask 130112
        %v422 = vsel %vm421, %v420, %v415
        %v423 = vadd.s32 %v411, 4294967280
        %v424 = vlaneseq
        %v425 = vshrl.u32 %v424, 7
        %v426 = vsub.s32 %v423, %v425
        %v427 = vrot.slane %v377, %v426
        %vm428 = vcmask 195712
        %v429 = vsel %vm428, %v427, %v422
        %v430 = vadd.s32 %v411, 4294967272
        %v431 = vlaneseq
        %v432 = vshrl.u32 %v431, 7
        %v433 = vsub.s32 %v430, %v432
        %v434 = vrot.slane %v380, %v433
        %vm435 = vcmask 261312
        %v436 = vsel %vm435, %v434, %v429
        %v437 = vadd.s32 %v411, 4294967264
        %v438 = vlaneseq
        %v439 = vshrl.u32 %v438, 7
        %v440 = vsub.s32 %v437, %v439
        %v441 = vrot.slane %v383, %v440
        %vm442 = vcmask 326912
        %v443 = vsel %vm442, %v441, %v436
        %v444 = vadd.s32 %v411, 4294967256
        %v445 = vlaneseq
        %v446 = vshrl.u32 %v445, 7
        %v447 = vsub.s32 %v444, %v446
        %v448 = vrot.slane %v386, %v447
        %vm449 = vcmask 392512
        %v450 = vsel %vm449, %v448, %v443
        %v451 = vadd.s32 %v411, 4294967248
        %v452 = vlaneseq
        %v453 = vshrl.u32 %v452, 7
        %v454 = vsub.s32 %v451, %v453
        %v455 = vrot.slane %v389, %v454
        %vm456 = vcmask 458112
        %v457 = vsel %vm456, %v455, %v450
        %v458 = vadd.s32 %v411, 4294967240
        %v459 = vlaneseq
        %v460 = vshrl.u32 %v459, 7
        %v461 = vsub.s32 %v458, %v460
        %v462 = vrot.slane %v392, %v461
        %vm463 = vcmask 523712
        %v464 = vsel %vm463, %v462, %v457
        %vm465 = vcmask 523264
        %v466 = vsel %vm465, %v464, 0
        %468 = vmatprep.subr.mxu0 0.0
        %469 = vmatpush1.msra.mxu0 0.0
        %470 = vmatprep.subr.mxu0 0.0
        %471 = vmatpush1.msra.mxu0 0.0
        %472 = vmatprep.subr.mxu0 0.0
        %473 = vmatpush1.msra.mxu0 0.0
        %474 = vmatprep.subr.mxu0 0.0
        %475 = vmatpush1.msra.mxu0 0.0
        %476 = vmatprep.subr.mxu0 0.0
        %477 = vmatpush1.msra.mxu0 0.0
        %478 = vmatprep.subr.mxu0 0.0
        %479 = vmatpush1.msra.mxu0 0.0
        %480 = vmatprep.subr.mxu0 0.0
        %481 = vmatpush1.msra.mxu0 0.0
        %482 = vmatprep.subr.mxu0 0.0
        %483 = vmatpush1.msra.mxu0 0.0
        %484 = vmatprep.subr.mxu0 0.0
        %485 = vmatpush1.msra.mxu0 %v400
        %486 = vmatprep.subr.mxu0 0.0
        %487 = vmatpush1.msra.mxu0 %v399
        %488 = vmatprep.subr.mxu0 0.0
        %489 = vmatpush1.msra.mxu0 %v398
        %490 = vmatprep.subr.mxu0 0.0
        %491 = vmatpush1.msra.mxu0 %v397
        %492 = vmatprep.subr.mxu0 0.0
        %493 = vmatpush1.msra.mxu0 %v396
        %494 = vmatprep.subr.mxu0 0.0
        %495 = vmatpush1.msra.mxu0 %v395
        %496 = vmatprep.subr.mxu0 0.0
        %497 = vmatpush1.msra.mxu0 %v394
        %498 = vmatprep.subr.mxu0 0.0
        %499 = vmatpush1.msra.mxu0 %v393
        %500 = vmatprep.subr.mxu0 0.0
        %501 = vmatpush2.msra.mxu0 0.0
        %502 = vmatprep.subr.mxu0 0.0
        %503 = vmatpush2.msra.mxu0 0.0
        %504 = vmatprep.subr.mxu0 0.0
        %505 = vmatpush2.msra.mxu0 0.0
        %506 = vmatprep.subr.mxu0 0.0
        %507 = vmatpush2.msra.mxu0 0.0
        %508 = vmatprep.subr.mxu0 0.0
        %509 = vmatpush2.msra.mxu0 0.0
        %510 = vmatprep.subr.mxu0 0.0
        %511 = vmatpush2.msra.mxu0 0.0
        %512 = vmatprep.subr.mxu0 0.0
        %513 = vmatpush2.msra.mxu0 0.0
        %514 = vmatprep.subr.mxu0 0.0
        %515 = vmatpush2.msra.mxu0 0.0
        %516 = vmatprep.subr.mxu0 0.0
        %517 = vmatpush2.msra.mxu0 0.0
        %518 = vmatprep.subr.mxu0 0.0
        %519 = vmatpush2.msra.mxu0 0.0
        %520 = vmatprep.subr.mxu0 0.0
        %521 = vmatpush2.msra.mxu0 0.0
        %522 = vmatprep.subr.mxu0 0.0
        %523 = vmatpush2.msra.mxu0 0.0
        %524 = vmatprep.subr.mxu0 0.0
        %525 = vmatpush2.msra.mxu0 0.0
        %526 = vmatprep.subr.mxu0 0.0
        %527 = vmatpush2.msra.mxu0 0.0
        %528 = vmatprep.subr.mxu0 0.0
        %529 = vmatpush2.msra.mxu0 0.0
        %530 = vmatprep.subr.mxu0 0.0
        %531 = vmatpush2.msra.mxu0 0.0
        %532 = vmatprep.mubr.f32.mxu0 0.0
        %533 = vmatmul.mubr.f32.gmra.mxu0 %v466
        %v534 = vpop.f32.mrf.mxu0
        %v535 = vadd.f32 %v401, %v534
        %v536 = vpop.f32.mrf.mxu0
        %537 = vdwg.mxu0
        %v538 = vmax.f32 %v535, 0.0
        %v539 = vld [vmem:[%s4] sm:$0xf]
        %vm540 = vcmask 31744
        %v542 = vsel %vm540, %v538, 0
        %vm544 = vcmask 1043456
        %v546 = vsel %vm544, %v539, 0
        %548 = vmatprep.subr.mxu0 0.0
        %549 = vmatpush1.msra.mxu0 0.0
        %550 = vmatprep.subr.mxu0 0.0
        %551 = vmatpush1.msra.mxu0 0.0
        %552 = vmatprep.subr.mxu0 0.0
        %553 = vmatpush1.msra.mxu0 0.0
        %554 = vmatprep.subr.mxu0 0.0
        %555 = vmatpush1.msra.mxu0 0.0
        %556 = vmatprep.subr.mxu0 0.0
        %557 = vmatpush1.msra.mxu0 0.0
        %558 = vmatprep.subr.mxu0 0.0
        %559 = vmatpush1.msra.mxu0 0.0
        %560 = vmatprep.subr.mxu0 0.0
        %561 = vmatpush1.msra.mxu0 0.0
        %562 = vmatprep.subr.mxu0 0.0
        %563 = vmatpush1.msra.mxu0 0.0
        %564 = vmatprep.subr.mxu0 0.0
        %565 = vmatpush1.msra.mxu0 0.0
        %566 = vmatprep.subr.mxu0 0.0
        %567 = vmatpush1.msra.mxu0 0.0
        %568 = vmatprep.subr.mxu0 0.0
        %569 = vmatpush1.msra.mxu0 0.0
        %570 = vmatprep.subr.mxu0 0.0
        %571 = vmatpush1.msra.mxu0 0.0
        %572 = vmatprep.subr.mxu0 0.0
        %573 = vmatpush1.msra.mxu0 0.0
        %574 = vmatprep.subr.mxu0 0.0
        %575 = vmatpush1.msra.mxu0 0.0
        %576 = vmatprep.subr.mxu0 0.0
        %577 = vmatpush1.msra.mxu0 0.0
        %578 = vmatprep.subr.mxu0 0.0
        %579 = vmatpush1.msra.mxu0 %v546
        %580 = vmatprep.subr.mxu0 0.0
        %581 = vmatpush2.msra.mxu0 0.0
        %582 = vmatprep.subr.mxu0 0.0
        %583 = vmatpush2.msra.mxu0 0.0
        %584 = vmatprep.subr.mxu0 0.0
        %585 = vmatpush2.msra.mxu0 0.0
        %586 = vmatprep.subr.mxu0 0.0
        %587 = vmatpush2.msra.mxu0 0.0
        %588 = vmatprep.subr.mxu0 0.0
        %589 = vmatpush2.msra.mxu0 0.0
        %590 = vmatprep.subr.mxu0 0.0
        %591 = vmatpush2.msra.mxu0 0.0
        %592 = vmatprep.subr.mxu0 0.0
        %593 = vmatpush2.msra.mxu0 0.0
        %594 = vmatprep.subr.mxu0 0.0
        %595 = vmatpush2.msra.mxu0 0.0
        %596 = vmatprep.subr.mxu0 0.0
        %597 = vmatpush2.msra.mxu0 0.0
        %598 = vmatprep.subr.mxu0 0.0
        %599 = vmatpush2.msra.mxu0 0.0
        %600 = vmatprep.subr.mxu0 0.0
        %601 = vmatpush2.msra.mxu0 0.0
        %602 = vmatprep.subr.mxu0 0.0
        %603 = vmatpush2.msra.mxu0 0.0
        %604 = vmatprep.subr.mxu0 0.0
        %605 = vmatpush2.msra.mxu0 0.0
        %606 = vmatprep.subr.mxu0 0.0
        %607 = vmatpush2.msra.mxu0 0.0
        %608 = vmatprep.subr.mxu0 0.0
        %609 = vmatpush2.msra.mxu0 0.0
        %610 = vmatprep.subr.mxu0 0.0
        %611 = vmatpush2.msra.mxu0 0.0
        %612 = vmatprep.mubr.f32.mxu0 0.0
        %613 = vmatmul.mubr.f32.gmra.mxu0 %v542
        %v614 = vpop.f32.mrf.mxu0
        %v615 = vadd.f32 0.0, %v614
        %v616 = vpop.f32.mrf.mxu0
        %617 = vdwg.mxu0
        %v618 = vsub.f32 0.0, %v615
        %v619 = vmul.f32 %v618, 1.442695
        %v620 = vpow.pop %v619
        %v621 = vadd.f32 %v620, 1.0
        %v622 = vrcp.pop %v621
        %v623 = vsub.f32 1.0, %v622
        %v624 = vlaneseq
        %v625 = vshrl.u32 %v624, 7
        %v626 = vsub.s32 0, %v625
        %v627 = vrot.slane %v622, %v626
        %629 = vbcast.lane.b32.xlu0 %v627, 256
        %v630 = vpop.permute.xlu0 %629
        %s632 = sor.u32 256, 8
        %633 = vbcast.lane.b32.xlu0 %v627, %s632
        %v634 = vpop.permute.xlu0 %633
        %s636 = sor.u32 256, 16
        %637 = vbcast.lane.b32.xlu0 %v627, %s636
        %v638 = vpop.permute.xlu0 %637
        %s640 = sor.u32 256, 24
        %641 = vbcast.lane.b32.xlu0 %v627, %s640
        %v642 = vpop.permute.xlu0 %641
        %s644 = sor.u32 256, 32
        %645 = vbcast.lane.b32.xlu0 %v627, %s644
        %v646 = vpop.permute.xlu0 %645
        %s648 = sor.u32 256, 40
        %649 = vbcast.lane.b32.xlu0 %v627, %s648
        %v650 = vpop.permute.xlu0 %649
        %s652 = sor.u32 256, 48
        %653 = vbcast.lane.b32.xlu0 %v627, %s652
        %v654 = vpop.permute.xlu0 %653
        %s656 = sor.u32 256, 56
        %657 = vbcast.lane.b32.xlu0 %v627, %s656
        %v658 = vpop.permute.xlu0 %657
        %v659 = vmul.f32 %v630, %v321
        %v660 = vmul.f32 %v630, %v322
        %v661 = vmul.f32 %v634, %v323
        %v662 = vmul.f32 %v634, %v324
        %v663 = vmul.f32 %v638, %v325
        %v664 = vmul.f32 %v638, %v326
        %v665 = vmul.f32 %v642, %v327
        %v666 = vmul.f32 %v642, %v328
        %v667 = vmul.f32 %v646, %v329
        %v668 = vmul.f32 %v646, %v330
        %v669 = vmul.f32 %v650, %v331
        %v670 = vmul.f32 %v650, %v332
        %v671 = vmul.f32 %v654, %v333
        %v672 = vmul.f32 %v654, %v334
        %v673 = vmul.f32 %v658, %v335
        %v674 = vmul.f32 %v658, %v336
        %675 = vst [vmem:[%s313] sm:$0xff] %v659
        %676 = vst [vmem:[%s313 + $0x8] sm:$0xff] %v660
        %677 = vst [vmem:[%s313 + $0x10] sm:$0xff] %v661
        %678 = vst [vmem:[%s313 + $0x18] sm:$0xff] %v662
        %679 = vst [vmem:[%s313 + $0x20] sm:$0xff] %v663
        %680 = vst [vmem:[%s313 + $0x28] sm:$0xff] %v664
        %681 = vst [vmem:[%s313 + $0x30] sm:$0xff] %v665
        %682 = vst [vmem:[%s313 + $0x38] sm:$0xff] %v666
        %683 = vst [vmem:[%s313 + $0x40] sm:$0xff] %v667
        %684 = vst [vmem:[%s313 + $0x48] sm:$0xff] %v668
        %685 = vst [vmem:[%s313 + $0x50] sm:$0xff] %v669
        %686 = vst [vmem:[%s313 + $0x58] sm:$0xff] %v670
        %687 = vst [vmem:[%s313 + $0x60] sm:$0xff] %v671
        %688 = vst [vmem:[%s313 + $0x68] sm:$0xff] %v672
        %689 = vst [vmem:[%s313 + $0x70] sm:$0xff] %v673
        %690 = vst [vmem:[%s313 + $0x78] sm:$0xff] %v674
        %v691 = vlaneseq
        %v692 = vshrl.u32 %v691, 7
        %v693 = vsub.s32 0, %v692
        %v694 = vrot.slane %v623, %v693
        %696 = vbcast.lane.b32.xlu0 %v694, 256
        %v697 = vpop.permute.xlu0 %696
        %s699 = sor.u32 256, 8
        %700 = vbcast.lane.b32.xlu0 %v694, %s699
        %v701 = vpop.permute.xlu0 %700
        %s703 = sor.u32 256, 16
        %704 = vbcast.lane.b32.xlu0 %v694, %s703
        %v705 = vpop.permute.xlu0 %704
        %s707 = sor.u32 256, 24
        %708 = vbcast.lane.b32.xlu0 %v694, %s707
        %v709 = vpop.permute.xlu0 %708
        %s711 = sor.u32 256, 32
        %712 = vbcast.lane.b32.xlu0 %v694, %s711
        %v713 = vpop.permute.xlu0 %712
        %s715 = sor.u32 256, 40
        %716 = vbcast.lane.b32.xlu0 %v694, %s715
        %v717 = vpop.permute.xlu0 %716
        %s719 = sor.u32 256, 48
        %720 = vbcast.lane.b32.xlu0 %v694, %s719
        %v721 = vpop.permute.xlu0 %720
        %s723 = sor.u32 256, 56
        %724 = vbcast.lane.b32.xlu0 %v694, %s723
        %v725 = vpop.permute.xlu0 %724
        %v726 = vmul.f32 %v697, %v337
        %v727 = vmul.f32 %v697, %v338
        %v728 = vmul.f32 %v701, %v339
        %v729 = vmul.f32 %v701, %v340
        %v730 = vmul.f32 %v705, %v341
        %v731 = vmul.f32 %v705, %v342
        %v732 = vmul.f32 %v709, %v343
        %v733 = vmul.f32 %v709, %v344
        %v734 = vmul.f32 %v713, %v345
        %v735 = vmul.f32 %v713, %v346
        %v736 = vmul.f32 %v717, %v347
        %v737 = vmul.f32 %v717, %v348
        %v738 = vmul.f32 %v721, %v349
        %v739 = vmul.f32 %v721, %v350
        %v740 = vmul.f32 %v725, %v351
        %v741 = vmul.f32 %v725, %v352
        %742 = vst [vmem:[%s320] sm:$0xff] %v726
        %743 = vst [vmem:[%s320 + $0x8] sm:$0xff] %v727
        %744 = vst [vmem:[%s320 + $0x10] sm:$0xff] %v728
        %745 = vst [vmem:[%s320 + $0x18] sm:$0xff] %v729
        %746 = vst [vmem:[%s320 + $0x20] sm:$0xff] %v730
        %747 = vst [vmem:[%s320 + $0x28] sm:$0xff] %v731
        %748 = vst [vmem:[%s320 + $0x30] sm:$0xff] %v732
        %749 = vst [vmem:[%s320 + $0x38] sm:$0xff] %v733
        %750 = vst [vmem:[%s320 + $0x40] sm:$0xff] %v734
        %751 = vst [vmem:[%s320 + $0x48] sm:$0xff] %v735
        %752 = vst [vmem:[%s320 + $0x50] sm:$0xff] %v736
        %753 = vst [vmem:[%s320 + $0x58] sm:$0xff] %v737
        %754 = vst [vmem:[%s320 + $0x60] sm:$0xff] %v738
        %755 = vst [vmem:[%s320 + $0x68] sm:$0xff] %v739
        %756 = vst [vmem:[%s320 + $0x70] sm:$0xff] %v740
        %757 = vst [vmem:[%s320 + $0x78] sm:$0xff] %v741
        %s758 = sand.u32 %s153, 1
        %s759 = scalar_lea.sflag [#allocation4], %s758
        %s760 = sand.u32 %s153, 1
        %s761 = smul.addr %s760, 128
        %s762 = scalar_lea.vmem [#allocation7], %s761
        %s763 = sand.u32 %s179, 1
        %s764 = scalar_lea.sflag [#allocation9], %s763
        %s765 = sand.u32 %s179, 1
        %s766 = smul.addr %s765, 128
        %s767 = scalar_lea.vmem [#allocation8], %s766
        // Predicated region
        $region49: #{tpu_custom_call.1} parent=39 // pred_check
          %p768 = pneg %p163
        $region50: #{tpu_custom_call.1} parent=39 // pred_check_branch
          %770 = sbr.rel (%p768) target = $region52
        $region51: #{tpu_custom_call.1} parent=39 // pred_region
          %s772 = ssub.s32 2048, 2048
          %773 = vsyncadd %s759, %s772
          %s774 = smul.addr %s30, 16
          %s775 = smul.addr %s774, 128
          %s776 = scalar_lea.hbm %s5, %s775
          %s777 = sshll.u32 %s762, 4
          %s778 = int_to_ptr.vmem [resolvable:$true] %s777
          %783 = dma.vmem_to_hbm [thread:$0]  %s778, 2048, %s776, %s759, 256, 256, 16
        $region52: #{tpu_custom_call.1} parent=39 // pred_fallthru
          _
        // Predicated region
        $region53: #{tpu_custom_call.1} parent=39 // pred_check
          %p784 = pneg %p189
        $region54: #{tpu_custom_call.1} parent=39 // pred_check_branch
          %786 = sbr.rel (%p784) target = $region56
        $region55: #{tpu_custom_call.1} parent=39 // pred_region
          %s788 = ssub.s32 2048, 2048
          %789 = vsyncadd %s764, %s788
          %s790 = smul.addr %s30, 16
          %s791 = smul.addr %s790, 128
          %s792 = scalar_lea.hbm %s6, %s791
          %s793 = sshll.u32 %s767, 4
          %s794 = int_to_ptr.vmem [resolvable:$true] %s793
          %799 = dma.vmem_to_hbm [thread:$0]  %s794, 2048, %s792, %s764, 256, 256, 16
        $region56: #{tpu_custom_call.1} parent=39 // pred_fallthru
          _
      $region40: #{tpu_custom_call.1} parent=5 // pred_fallthru
        _
      %p800 = scmp.le.s32.totalorder 2, %s25
      // Predicated region
      $region57: #{tpu_custom_call.1} parent=5 // pred_check
        %p801 = pneg %p800
      $region58: #{tpu_custom_call.1} parent=5 // pred_check_branch
        %803 = sbr.rel (%p801) target = $region60
      $region59: #{tpu_custom_call.1} parent=5 // pred_region
        %s804 = ssub.s32 %s25, 2
        // Predicated region
        $region61: #{tpu_custom_call.1} parent=59 // pred_check
          %p805 = pneg %p169
        $region62: #{tpu_custom_call.1} parent=59 // pred_check_branch
          %807 = sbr.rel (%p805) target = $region64
        $region63: #{tpu_custom_call.1} parent=59 // pred_region
          %s808 = sand.u32 %s154, 1
          %s809 = scalar_lea.sflag [#allocation4], %s808
          %s810 = sand.u32 %s154, 1
          %s811 = smul.addr %s810, 128
          %s812 = scalar_lea.vmem [#allocation7], %s811
          %813 = dma.done %s809, 2048
        $region64: #{tpu_custom_call.1} parent=59 // pred_fallthru
          _
        // Predicated region
        $region65: #{tpu_custom_call.1} parent=59 // pred_check
          %p814 = pneg %p195
        $region66: #{tpu_custom_call.1} parent=59 // pred_check_branch
          %816 = sbr.rel (%p814) target = $region68
        $region67: #{tpu_custom_call.1} parent=59 // pred_region
          %s817 = sand.u32 %s180, 1
          %s818 = scalar_lea.sflag [#allocation9], %s817
          %s819 = sand.u32 %s180, 1
          %s820 = smul.addr %s819, 128
          %s821 = scalar_lea.vmem [#allocation8], %s820
          %822 = dma.done %s818, 2048
        $region68: #{tpu_custom_call.1} parent=59 // pred_fallthru
          _
      $region60: #{tpu_custom_call.1} parent=5 // pred_fallthru
        _
    $region6: #{tpu_custom_call.1} parent=1 // loop_footer
      %s29 = sadd.s32 1, %s25
    $region7: #{tpu_custom_call.1} parent=1 // loop_footer_branch
      %24 = sbr.rel target = $region3
    $region8: #{tpu_custom_call.1} parent=1 // loop_exit
      _
    %823 = vsyncpa [#allocation3], 1
    %s824 = scalar_lea.sflag [#allocation3], 1
    %825 = vsyncpa %s824, 1
    %826 = vsyncpa [#allocation6], 1
    %s827 = scalar_lea.sflag [#allocation6], 1
    %828 = vsyncpa %s827, 1
    %829 = vsyncpa [#allocation4], 1
    %s830 = scalar_lea.sflag [#allocation4], 1
    %831 = vsyncpa %s830, 1
    %832 = vsyncpa [#allocation9], 1
    %s833 = scalar_lea.sflag [#allocation9], 1
    %834 = vsyncpa %s833, 1

</llo_original>
